<compile_context>
chip_gen: v5e
topology: v5e:2x2
jax: 0.10.0
libtpu: 0.0.40
codegen_flags: <defaults>
</compile_context>

<pallas_src>
import jax
import jax.numpy as jnp
from jax.experimental import pallas as pl
from jax.experimental.pallas import tpu as pltpu


def _round_up(x, m):
    return ((x + m - 1) // m) * m


def _vmem_capacity_bytes():
    """Physical VMEM of the local chip; conservative fallback if unqueryable."""
    try:
        cap = getattr(pltpu.get_tpu_info(), "vmem_capacity_bytes", None)
        if cap:
            return int(cap)
    except Exception:
        pass
    return 64 << 20  # v7x-sized fallback (smallest current generation)


def _make_kernel(denom_col, assume_bounded):
    def kernel(sim_ref, y_ref, out_ref):
        # sim_ref: [TQ, S]   similarities tile (any float dtype, upcast to f32)
        # y_ref:   [S, Cpad] bf16 labels; column `denom_col` is all ones
        # out_ref: [TQ, Cpad] f32 predictions tile
        sim = sim_ref[...].astype(jnp.float32)

        if assume_bounded:
            # Cosine-like inputs in [-1, 1]: skip the S-wide max reduce entirely.
            e = jnp.exp(sim - 1.0)
        else:
            row_max = jnp.max(sim, axis=1, keepdims=True)  # XLU reduce
            e = jnp.exp(sim - row_max)                     # EUP

        # Single MXU pass produces both the un-normalized class scores and (via the
        # all-ones label column) the softmax denominator, with consistent bf16
        # rounding of exp() in numerator and denominator.
        acc = jnp.dot(e.astype(jnp.bfloat16), y_ref[...],
                      preferred_element_type=jnp.float32)  # [TQ, Cpad] f32

        denom = acc[:, denom_col:denom_col + 1]            # [TQ, 1]
        out_ref[...] = (acc * pl.reciprocal(denom, approx=True)).astype(out_ref.dtype)

    return kernel


def attentional_regressor(similarities, support_set_y, *, tq_max=512,
                          assume_bounded=False):
    """similarities: [Q, S] float (f32 or bf16), support_set_y: [S, C] -> [Q, C] f32."""
    Q, S = similarities.shape
    S2, C = support_set_y.shape
    assert S == S2, "support axis mismatch"

    LANE = 128
    sim_itemsize = jnp.dtype(similarities.dtype).itemsize
    sub = max(8, 32 // max(sim_itemsize, 1))  # sublane packing: 8 for f32, 16 for bf16

    # Lane-dense label matrix with one extra all-ones column (fused denominator).
    c_pad = _round_up(C + 1, LANE)
    y_p = jnp.concatenate(
        [support_set_y.astype(jnp.bfloat16), jnp.ones((S, 1), jnp.bfloat16)], axis=1)
    if c_pad > C + 1:
        y_p = jnp.pad(y_p, ((0, 0), (0, c_pad - (C + 1))))

    # Generation-aware Q tile: solve tq from the VMEM budget.
    #   per Q-row: sim double buffer + f32 upcast/exp temp + bf16 MXU operand copy
    #              + double-buffered f32 output row
    #   fixed:     double-buffered bf16 label block
    vmem_cap = _vmem_capacity_bytes()
    budget = (vmem_cap * 3) // 4
    per_row = S * (2 * sim_itemsize + 4 + 2) + 2 * c_pad * 4
    fixed = 2 * S * c_pad * 2
    avail = budget - fixed
    tq = sub if avail < per_row * sub else min(tq_max, avail // per_row)
    tq = min(tq, _round_up(Q, sub))     # no point tiling wider than (padded) Q
    tq = max(sub, (tq // sub) * sub)

    grid = (pl.cdiv(Q, tq),)            # last block ragged; no jnp.pad of similarities

    est = (2 * tq * S * sim_itemsize + tq * S * (4 + 2) + fixed + 2 * tq * c_pad * 4)
    vmem_limit = int(min(max(est + est // 2, 8 << 20), vmem_cap - (2 << 20)))

    out = pl.pallas_call(
        _make_kernel(C, assume_bounded),
        out_shape=jax.ShapeDtypeStruct((Q, c_pad), jnp.float32),
        grid=grid,
        in_specs=[
            pl.BlockSpec((tq, S), lambda i: (i, 0)),       # stream Q tiles of sims
            pl.BlockSpec((S, c_pad), lambda i: (0, 0)),    # labels resident
        ],
        out_specs=pl.BlockSpec((tq, c_pad), lambda i: (i, 0)),
        compiler_params=pltpu.CompilerParams(
            # TODO(synk): on v7x verify the Q axis shards across both TensorCores;
            # if one TC idles in the trace, switch to pltpu.CORE_PARALLEL.
            dimension_semantics=("parallel",),
            vmem_limit_bytes=vmem_limit),
    )(similarities, y_p)

    return out[:, :C]


def _reference(similarities, support_set_y):
    probs = jax.nn.softmax(similarities.astype(jnp.float32), axis=1)
    return probs @ support_set_y.astype(jnp.float32)


if __name__ == "__main__":
    key = jax.random.PRNGKey(0)
    k_sim, k_lab = jax.random.split(key)

    Q = 8    # batch size of query set
    S = 16   # batch size of support set
    C = 4    # number of classes

    # Cosine-similarity-like inputs in [-1, 1].
    similarities = jax.random.uniform(
        k_sim, (Q, S), dtype=jnp.float32, minval=-1.0, maxval=1.0)

    # One-hot labels for the support set.
    labels = jax.random.randint(k_lab, (S,), 0, C)
    support_set_y = jax.nn.one_hot(labels, C, dtype=jnp.float32)

    preds = attentional_regressor(similarities, support_set_y)
    preds = jax.block_until_ready(preds)

    ref = _reference(similarities, support_set_y)
    assert preds.shape == (Q, C)
    # bf16 MXU operands + approx reciprocal -> ~1e-3-level error; loose tolerance.
    assert jnp.allclose(preds, ref, atol=2e-2, rtol=2e-2), "mismatch vs reference"

    print("KERNEL_OK")
</pallas_src>

<mosaic_0001>
module attributes {stable_mosaic.version = 11 : i64} {
  func.func @kernel(%arg0: i32, %arg1: memref<8x16xf32, #tpu.memory_space<vmem>>, %arg2: memref<16x128xbf16, #tpu.memory_space<vmem>>, %arg3: memref<8x128xf32, #tpu.memory_space<vmem>>) attributes {dimension_semantics = [#tpu.dimension_semantics<parallel>], iteration_bounds = array<i64: 1>, scalar_prefetch = 0 : i64, scratch_operands = 0 : i64, tpu.core_type = #tpu.core_type<tc>, window_params = [{transform_indices = @transform_0, window_bounds = array<i64: 8, 16>}, {pipeline_mode = #tpu.pipeline_mode<synchronous>, transform_indices = @transform_1, window_bounds = array<i64: 16, 128>}, {transform_indices = @transform_2, window_bounds = array<i64: 8, 128>}]} {
    %c0 = arith.constant 0 : index
    %c0_0 = arith.constant 0 : index
    %0 = vector.load %arg1[%c0, %c0_0] : memref<8x16xf32, #tpu.memory_space<vmem>>, vector<8x16xf32>
    %cst = arith.constant dense<0xFF800000> : vector<8xf32>
    %1 = vector.multi_reduction <maximumf>, %0, %cst [1] : vector<8x16xf32> to vector<8xf32>
    %2 = vector.shape_cast %1 : vector<8xf32> to vector<8x1xf32>
    %3 = vector.broadcast %2 : vector<8x1xf32> to vector<8x16xf32>
    %4 = arith.subf %0, %3 : vector<8x16xf32>
    %5 = math.exp %4 : vector<8x16xf32>
    %6 = arith.truncf %5 : vector<8x16xf32> to vector<8x16xbf16>
    %c0_1 = arith.constant 0 : index
    %c0_2 = arith.constant 0 : index
    %7 = vector.load %arg2[%c0_1, %c0_2] : memref<16x128xbf16, #tpu.memory_space<vmem>>, vector<16x128xbf16>
    %cst_3 = arith.constant dense<0.000000e+00> : vector<8x128xf32>
    %8 = tpu.matmul %6, %7, %cst_3 {dimension_numbers = #tpu.dot_dimension_numbers<[1], [0], [0], [1], [0, 0, 1, 1], [], []>} : vector<8x16xbf16>, vector<16x128xbf16>, vector<8x128xf32> -> vector<8x128xf32>
    %9 = vector.extract_strided_slice %8 {offsets = [0, 4], sizes = [8, 1], strides = [1, 1]} : vector<8x128xf32> to vector<8x1xf32>
    %10 = tpu.reciprocal %9 {approx = true} : vector<8x1xf32> -> vector<8x1xf32>
    %11 = vector.broadcast %10 : vector<8x1xf32> to vector<8x128xf32>
    %12 = arith.mulf %8, %11 : vector<8x128xf32>
    %c0_4 = arith.constant 0 : index
    %c0_5 = arith.constant 0 : index
    %13 = vector.load %arg3[%c0_4, %c0_5] : memref<8x128xf32, #tpu.memory_space<vmem>>, vector<8x128xf32>
    tpu.vector_store %arg3[%c0_4, %c0_5], %12 {strides = array<i32>} : memref<8x128xf32, #tpu.memory_space<vmem>>, vector<8x128xf32>,
    return
  }
  func.func @transform_0(%arg0: i32) -> (i32, i32) {
    %c0_i32 = arith.constant 0 : i32
    %c0_i32_0 = arith.constant 0 : i32
    return %arg0, %c0_i32 : i32, i32
  }
  func.func @transform_1(%arg0: i32) -> (i32, i32) {
    %c0_i32 = arith.constant 0 : i32
    %c0_i32_0 = arith.constant 0 : i32
    %c0_i32_1 = arith.constant 0 : i32
    return %c0_i32, %c0_i32_0 : i32, i32
  }
  func.func @transform_2(%arg0: i32) -> (i32, i32) {
    %c0_i32 = arith.constant 0 : i32
    %c0_i32_0 = arith.constant 0 : i32
    return %arg0, %c0_i32 : i32, i32
  }
}

</mosaic_0001>

<llo_original>
// kernel: tpu_custom_call.1
$region0: #{tpu_custom_call.1}
  #allocation0 [shape = 'u32[]', space=smem, size = 0x4, offset = 0x4, fixed_abs, tag = 'smem constant byte address 0x4 - core index']
  #allocation1 [shape = 'u32[72,128]{1,0:T(1,128)}', space=vmem, size = 0x9000, scoped, tag = 'internal scratch']
  %s0 = inlined_call_operand.hbm [shape: f32[8,16], index: 0, kind: input, shape index: {}]
  %s1 = inlined_call_operand.hbm [shape: bf16[16,128], index: 1, kind: input, shape index: {}]
  %s2 = inlined_call_operand.hbm [shape: f32[8,128], index: 2, kind: output, shape index: {}]
  %s3 = sld [smem:[#allocation0]]
  $region26: #{tpu_custom_call.1} parent=0
    _
  %s5 = ssub.s32 1, %s3
  %s6 = scalar_select 0, %s5, %s3
  $region1: #{tpu_custom_call.1} parent=0
    #allocation2 [shape = 'u8[4096]{0}', space=vmem, size = 0x1000, scoped, tag = 'input window, operand 0, single buffered']
    #allocation3 [shape = 's32[1]{0}', space=sflag, size = 0x4, scoped, tag = 'scoped memory for tpu_custom_call.1']
    #allocation4 [shape = 's32[1]{0}', space=sflag, size = 0x4, scoped, tag = 'scoped memory for tpu_custom_call.1']
    #allocation5 [shape = 'u8[4096]{0}', space=vmem, size = 0x1000, scoped, tag = 'input window, operand 1, single buffered']
    #allocation6 [shape = 's32[1]{0}', space=sflag, size = 0x4, scoped, tag = 'scoped memory for tpu_custom_call.1']
    #allocation7 [shape = 'u8[4096]{0}', space=vmem, size = 0x1000, scoped, tag = 'output window, operand 0, single buffered']
    %7 = vsyncpa [#allocation3], 0
    %8 = vsyncpa [#allocation6], 0
    %9 = vsyncpa [#allocation4], 0
    // Predicated region
    $region2: #{tpu_custom_call.1} parent=1 // pred_check
      _
    $region3: #{tpu_custom_call.1} parent=1 // pred_check_branch
      %11 = sbr.rel (0) target = $region5
    $region4: #{tpu_custom_call.1} parent=1 // pred_region
      %13 = vsyncadd [#allocation3], 0
      %s15 = sshll.u32 %s0, 4
      %s16 = int_to_ptr.hbm [resolvable:$true] %s15
      %s17 = sshll.u32 [#allocation2], 4
      %s18 = int_to_ptr.vmem [resolvable:$true] %s17
      %20 = dma.hbm_to_vmem [thread:$0]  %s16, 128, %s18, [#allocation3]
    $region5: #{tpu_custom_call.1} parent=1 // pred_fallthru
      _
    // Predicated region
    $region6: #{tpu_custom_call.1} parent=1 // pred_check
      _
    $region7: #{tpu_custom_call.1} parent=1 // pred_check_branch
      %22 = sbr.rel (0) target = $region9
    $region8: #{tpu_custom_call.1} parent=1 // pred_region
      %24 = vsyncadd [#allocation6], 0
      %s25 = sshll.u32 %s1, 4
      %s26 = int_to_ptr.hbm [resolvable:$true] %s25
      %s27 = sshll.u32 [#allocation5], 4
      %s28 = int_to_ptr.vmem [resolvable:$true] %s27
      %33 = dma.hbm_to_vmem [thread:$0]  %s26, 128, %s28, [#allocation6], 64, 64, 4
    $region9: #{tpu_custom_call.1} parent=1 // pred_fallthru
      _
    // Predicated region
    $region10: #{tpu_custom_call.1} parent=1 // pred_check
      _
    $region11: #{tpu_custom_call.1} parent=1 // pred_check_branch
      %35 = sbr.rel (0) target = $region13
    $region12: #{tpu_custom_call.1} parent=1 // pred_region
      %37 = dma.done [#allocation3], 128
    $region13: #{tpu_custom_call.1} parent=1 // pred_fallthru
      _
    // Predicated region
    $region14: #{tpu_custom_call.1} parent=1 // pred_check
      _
    $region15: #{tpu_custom_call.1} parent=1 // pred_check_branch
      %39 = sbr.rel (0) target = $region17
    $region16: #{tpu_custom_call.1} parent=1 // pred_region
      %41 = dma.done [#allocation6], 128
    $region17: #{tpu_custom_call.1} parent=1 // pred_fallthru
      _
    %v43 = vld [vmem:[#allocation2] sm:$0xff]
    %vm44 = vcmask 130048
    %v45 = vsel %vm44, %v43, -inf
    %46 = vmax.xlane.f32.xlu0 %v45
    %v47 = vpop.xlane.xlu0 %46
    %v48 = vsub.f32 %v43, %v47
    %v49 = vmul.f32 %v48, 1.442695
    %v50 = vpow.pop %v49
    %v51 = vpack.c.bf16 %v50, %v50
    %v52 = vld [vmem:[#allocation5] sm:$0xf]
    %v53 = vld [vmem:[#allocation5 + $0x4] sm:$0xf]
    %v56 = vunpack.c.l.b16 %v52
    %v57 = vunpack.c.l.b16 %v53
    %v58 = vpack.c.b16 %v57, %v56
    %v61 = vsel %vm44, %v51, 0
    %63 = vmatpush.bf16.msra.mxu0 0
    %64 = vmatpush.bf16.msra.mxu0 0
    %65 = vmatpush.bf16.msra.mxu0 0
    %66 = vmatpush.bf16.msra.mxu0 0
    %67 = vmatpush.bf16.msra.mxu0 0
    %68 = vmatpush.bf16.msra.mxu0 0
    %69 = vmatpush.bf16.msra.mxu0 0
    %70 = vmatpush.bf16.msra.mxu0 %v58
    %71 = vmatmul.bf16.gmra.mxu0 %v61
    %v72 = vpop.f32.mrf.mxu0
    %v73 = vadd.f32 0.0, %v72
    %v74 = vpop.f32.mrf.mxu0
    %75 = vdwg.mxu0
    %v76 = vrcp.pop %v73
    %78 = vset.pattern.permute.xlu0 4
    %79 = vperm.xlu0 %78, %v76
    %v80 = vpop.permute.xlu0 %79
    %v82 = vmul.f32 %v73, %v80
    %83 = vst [vmem:[#allocation7] sm:$0xff] %v82
    // Predicated region
    $region18: #{tpu_custom_call.1} parent=1 // pred_check
      _
    $region19: #{tpu_custom_call.1} parent=1 // pred_check_branch
      %85 = sbr.rel (0) target = $region21
    $region20: #{tpu_custom_call.1} parent=1 // pred_region
      %87 = vsyncadd [#allocation4], 0
      %s89 = sshll.u32 [#allocation7], 4
      %s90 = int_to_ptr.vmem [resolvable:$true] %s89
      %s91 = sshll.u32 %s2, 4
      %s92 = int_to_ptr.hbm [resolvable:$true] %s91
      %94 = dma.vmem_to_hbm [thread:$0]  %s90, 128, %s92, [#allocation4]
    $region21: #{tpu_custom_call.1} parent=1 // pred_fallthru
      _
    // Predicated region
    $region22: #{tpu_custom_call.1} parent=1 // pred_check
      _
    $region23: #{tpu_custom_call.1} parent=1 // pred_check_branch
      %96 = sbr.rel (0) target = $region25
    $region24: #{tpu_custom_call.1} parent=1 // pred_region
      %98 = dma.done [#allocation4], 128
    $region25: #{tpu_custom_call.1} parent=1 // pred_fallthru
      _
    %99 = vsyncpa [#allocation3], 1
    %100 = vsyncpa [#allocation6], 1
    %101 = vsyncpa [#allocation4], 1

</llo_original>
